<compile_context>
chip_gen: v6e
topology: v6e:2x2x1
jax: 0.10.0
libtpu: 0.0.40
codegen_flags: <defaults>
</compile_context>

<pallas_src>
import functools

import jax
import jax.numpy as jnp
from jax.experimental import pallas as pl
from jax.experimental.pallas import tpu as pltpu


def _msa_kernel(x_ref, wqkv_ref, wo_ref, bo_ref, o_ref, proj_s, ctx_s,
                *, heads, dim_head, approx_recip):
    """One batch element per grid step.

    x_ref    : (1, N, DIM)      activations (compute dtype)
    wqkv_ref : (DIM, 3*H*D)     fused projection, columns [Q*scale | K | V]
    wo_ref   : (H*D, DIM)       output projection
    bo_ref   : (1, DIM)         output bias (f32)
    o_ref    : (1, N, DIM)      output
    proj_s   : (N, 3*H*D) VMEM  fused-projection slab (compute dtype)
    ctx_s    : (N, H*D)   VMEM  concat-heads attention output (compute dtype)
    """
    x = x_ref[0]                                   # (N, DIM)
    cdt = x.dtype

    # ---- 1) Fused lane-dense QKV projection: one MXU pass, unmasked store ----
    proj_s[...] = jnp.dot(
        x, wqkv_ref[...], preferred_element_type=jnp.float32).astype(cdt)

    # ---- 2) Per-head attention: one (N, N) f32 score tile live at a time ----
    for h in range(heads):
        q_h = proj_s[:, pl.ds(h * dim_head, dim_head)]                  # (N, D)
        k_h = proj_s[:, pl.ds((heads + h) * dim_head, dim_head)]        # (N, D)
        v_h = proj_s[:, pl.ds((2 * heads + h) * dim_head, dim_head)]    # (N, D)

        # Scores: contract on D (rhs contracting dim 1 -> no explicit k.T).
        dots = jax.lax.dot_general(
            q_h, k_h, (((1,), (1,)), ((), ())),
            preferred_element_type=jnp.float32)                          # (N, N)

        m = jnp.max(dots, axis=-1, keepdims=True)
        e = jnp.exp(dots - m)
        denom = jnp.sum(e, axis=-1, keepdims=True)
        attn = (e * pl.reciprocal(denom, approx=approx_recip)).astype(cdt)
        # dropout(p=0.0) in eval mode is the identity.

        out_h = jnp.dot(attn, v_h, preferred_element_type=jnp.float32)   # (N, D)
        ctx_s[:, pl.ds(h * dim_head, dim_head)] = out_h.astype(cdt)

    # ---- 3) Single output projection: K = H*D, DIM output lanes ----
    out = jnp.dot(ctx_s[...], wo_ref[...], preferred_element_type=jnp.float32)
    o_ref[0] = (out + bo_ref[...]).astype(o_ref.dtype)


def prepare_msa_params(wq, wkv, wo, bo, *, heads, dim_head,
                       compute_dtype=jnp.bfloat16):
    """One-time weight re-layout (call once per parameter set, reuse per step).

    wq (DIM, H*D), wkv (DIM, 2*H*D) columns [Wk | Wv], wo (H*D, DIM), bo (DIM,)
    -> (wqkv (DIM, 3*H*D) with scale folded into Q, wo (H*D, DIM), bo (1, DIM)).
    """
    dim = wq.shape[0]
    inner = heads * dim_head
    scale = float(dim_head) ** -0.5
    wk = wkv[:, :inner]            # torch.chunk(kv, 2, dim=-1) column split
    wv = wkv[:, inner:]
    # Fold 1/sqrt(D) into the Q columns (removes an in-kernel VPU multiply).
    wqkv = jnp.concatenate([wq * scale, wk, wv], axis=1).astype(compute_dtype)
    wo_c = wo.astype(compute_dtype)
    bo2 = bo.reshape(1, dim).astype(jnp.float32)
    return wqkv, wo_c, bo2


def msa_forward(x, params, *, heads, dim_head, out_dtype=jnp.float32):
    """x: (B, N, DIM). params from prepare_msa_params. Returns (B, N, DIM)."""
    wqkv, wo_c, bo2 = params
    b, n, dim = x.shape
    inner = heads * dim_head
    cdt = wqkv.dtype
    x_c = x.astype(cdt)

    # Approx reciprocal (EUP) only on the reduced-precision path.
    approx_recip = bool(jnp.dtype(cdt) != jnp.dtype(jnp.float32))

    # Working-set estimate for the scoped-VMEM limit (never below default).
    item = jnp.dtype(cdt).itemsize
    est = (2 * n * dim * (item + 4)          # x block + out block (double-buffered)
           + 2 * dim * 3 * inner * item      # wqkv (double-buffered)
           + 2 * inner * dim * item          # wo   (double-buffered)
           + 2 * dim * 4                     # bias
           + n * 3 * inner * item            # proj scratch
           + n * inner * item                # concat-heads scratch
           + 3 * n * n * 4)                  # one head's dots / e / attn
    vmem_limit = int(min(96 << 20, max(32 << 20, 2 * est)))

    kernel = functools.partial(_msa_kernel, heads=heads, dim_head=dim_head,
                               approx_recip=approx_recip)

    return pl.pallas_call(
        kernel,
        out_shape=jax.ShapeDtypeStruct((b, n, dim), out_dtype),
        grid_spec=pltpu.PrefetchScalarGridSpec(
            num_scalar_prefetch=0,
            grid=(b,),
            in_specs=[
                pl.BlockSpec((1, n, dim), lambda i: (i, 0, 0)),       # x
                pl.BlockSpec((dim, 3 * inner), lambda i: (0, 0)),     # Wqkv
                pl.BlockSpec((inner, dim), lambda i: (0, 0)),         # Wo
                pl.BlockSpec((1, dim), lambda i: (0, 0)),             # bo
            ],
            out_specs=pl.BlockSpec((1, n, dim), lambda i: (i, 0, 0)),
            scratch_shapes=[
                pltpu.VMEM((n, 3 * inner), cdt),   # fused QKV projection slab
                pltpu.VMEM((n, inner), cdt),       # concat-heads attn output
            ],
        ),
        compiler_params=pltpu.CompilerParams(
            dimension_semantics=("parallel",),
            vmem_limit_bytes=vmem_limit),
    )(x_c, wqkv, wo_c, bo2)


def msa_reference(x, wq, wkv, wo, bo, *, heads, dim_head):
    """Pure-JAX reference mirroring the PyTorch forward (eval mode)."""
    b, n, dim = x.shape
    inner = heads * dim_head
    scale = float(dim_head) ** -0.5
    q = x @ wq
    kv = x @ wkv
    k, v = kv[..., :inner], kv[..., inner:]

    def split(t):  # b n (h d) -> b h n d
        return t.reshape(b, n, heads, dim_head).transpose(0, 2, 1, 3)

    q, k, v = split(q), split(k), split(v)
    dots = jnp.einsum('bhid,bhjd->bhij', q, k) * scale
    attn = jax.nn.softmax(dots, axis=-1)
    out = jnp.einsum('bhij,bhjd->bhid', attn, v)
    out = out.transpose(0, 2, 1, 3).reshape(b, n, inner)
    return out @ wo + bo


if __name__ == "__main__":
    # Small shapes consistent with the module.
    B, N, DIM = 2, 8, 32
    HEADS, DIM_HEAD = 4, 16
    INNER = HEADS * DIM_HEAD

    key = jax.random.PRNGKey(0)
    kx, kq, kkv, ko, kb = jax.random.split(key, 5)

    x = jax.random.normal(kx, (B, N, DIM), dtype=jnp.float32)
    # Deterministic parameter init (nn.Linear-like scale); stored as (in, out).
    wq = jax.random.normal(kq, (DIM, INNER), dtype=jnp.float32) * (DIM ** -0.5)
    wkv = jax.random.normal(kkv, (DIM, 2 * INNER), dtype=jnp.float32) * (DIM ** -0.5)
    wo = jax.random.normal(ko, (INNER, DIM), dtype=jnp.float32) * (INNER ** -0.5)
    bo = jax.random.normal(kb, (DIM,), dtype=jnp.float32) * 0.01

    ref = msa_reference(x, wq, wkv, wo, bo, heads=HEADS, dim_head=DIM_HEAD)

    # f32 compute path: tight check against the pure-JAX reference.
    params_f32 = prepare_msa_params(wq, wkv, wo, bo, heads=HEADS,
                                    dim_head=DIM_HEAD,
                                    compute_dtype=jnp.float32)
    out_f32 = msa_forward(x, params_f32, heads=HEADS, dim_head=DIM_HEAD)
    out_f32 = jax.block_until_ready(out_f32)
    assert out_f32.shape == (B, N, DIM)
    assert jnp.allclose(out_f32, ref, atol=1e-4, rtol=1e-4), "f32 mismatch"

    # bf16 compute path (v6e/v7x fast path): bf16 matmul inputs, f32 accum.
    params_bf16 = prepare_msa_params(wq, wkv, wo, bo, heads=HEADS,
                                     dim_head=DIM_HEAD,
                                     compute_dtype=jnp.bfloat16)
    out_bf16 = msa_forward(x, params_bf16, heads=HEADS, dim_head=DIM_HEAD)
    out_bf16 = jax.block_until_ready(out_bf16)
    assert out_bf16.shape == (B, N, DIM)
    assert jnp.allclose(out_bf16, ref, atol=5e-2, rtol=5e-2), "bf16 mismatch"

    print("KERNEL_OK")
</pallas_src>

<mosaic_0001>
module attributes {stable_mosaic.version = 11 : i64} {
  func.func @_msa_kernel(%arg0: i32, %arg1: memref<1x8x32xf32, #tpu.memory_space<vmem>>, %arg2: memref<32x192xf32, #tpu.memory_space<vmem>>, %arg3: memref<64x32xf32, #tpu.memory_space<vmem>>, %arg4: memref<1x32xf32, #tpu.memory_space<vmem>>, %arg5: memref<1x8x32xf32, #tpu.memory_space<vmem>>, %arg6: memref<8x192xf32, #tpu.memory_space<vmem>>, %arg7: memref<8x64xf32, #tpu.memory_space<vmem>>) attributes {dimension_semantics = [#tpu.dimension_semantics<parallel>], iteration_bounds = array<i64: 2>, scalar_prefetch = 0 : i64, scratch_operands = 2 : i64, tpu.core_type = #tpu.core_type<tc>, window_params = [{transform_indices = @transform_0, window_bounds = array<i64: 1, 8, 32>}, {pipeline_mode = #tpu.pipeline_mode<synchronous>, transform_indices = @transform_1, window_bounds = array<i64: 32, 192>}, {pipeline_mode = #tpu.pipeline_mode<synchronous>, transform_indices = @transform_2, window_bounds = array<i64: 64, 32>}, {pipeline_mode = #tpu.pipeline_mode<synchronous>, transform_indices = @transform_3, window_bounds = array<i64: 1, 32>}, {transform_indices = @transform_4, window_bounds = array<i64: 1, 8, 32>}]} {
    %c0 = arith.constant 0 : index
    %c0_0 = arith.constant 0 : index
    %c0_1 = arith.constant 0 : index
    %0 = vector.load %arg1[%c0, %c0_0, %c0_1] : memref<1x8x32xf32, #tpu.memory_space<vmem>>, vector<1x8x32xf32>
    %1 = vector.shape_cast %0 : vector<1x8x32xf32> to vector<8x32xf32>
    %c0_2 = arith.constant 0 : index
    %c0_3 = arith.constant 0 : index
    %2 = vector.load %arg2[%c0_2, %c0_3] : memref<32x192xf32, #tpu.memory_space<vmem>>, vector<32x192xf32>
    %cst = arith.constant dense<0.000000e+00> : vector<8x192xf32>
    %3 = tpu.matmul %1, %2, %cst {dimension_numbers = #tpu.dot_dimension_numbers<[1], [0], [0], [1], [0, 0, 1, 1], [], []>} : vector<8x32xf32>, vector<32x192xf32>, vector<8x192xf32> -> vector<8x192xf32>
    %c0_4 = arith.constant 0 : index
    %c0_5 = arith.constant 0 : index
    %4 = vector.load %arg6[%c0_4, %c0_5] : memref<8x192xf32, #tpu.memory_space<vmem>>, vector<8x192xf32>
    tpu.vector_store %arg6[%c0_4, %c0_5], %3 {strides = array<i32>} : memref<8x192xf32, #tpu.memory_space<vmem>>, vector<8x192xf32>,
    %c0_6 = arith.constant 0 : index
    %c0_7 = arith.constant 0 : index
    %5 = vector.load %arg6[%c0_6, %c0_7] : memref<8x192xf32, #tpu.memory_space<vmem>>, vector<8x16xf32>
    %c0_8 = arith.constant 0 : index
    %c64 = arith.constant 64 : index
    %6 = vector.load %arg6[%c0_8, %c64] : memref<8x192xf32, #tpu.memory_space<vmem>>, vector<8x16xf32>
    %c0_9 = arith.constant 0 : index
    %c128 = arith.constant 128 : index
    %7 = vector.load %arg6[%c0_9, %c128] : memref<8x192xf32, #tpu.memory_space<vmem>>, vector<8x16xf32>
    %cst_10 = arith.constant dense<0.000000e+00> : vector<8x8xf32>
    %8 = tpu.matmul %5, %6, %cst_10 {dimension_numbers = #tpu.dot_dimension_numbers<[1], [1], [0], [0], [0, 0, 1, 0], [], []>} : vector<8x16xf32>, vector<8x16xf32>, vector<8x8xf32> -> vector<8x8xf32>
    %cst_11 = arith.constant dense<0xFF800000> : vector<8xf32>
    %9 = vector.multi_reduction <maximumf>, %8, %cst_11 [1] : vector<8x8xf32> to vector<8xf32>
    %10 = vector.shape_cast %9 : vector<8xf32> to vector<8x1xf32>
    %11 = vector.broadcast %10 : vector<8x1xf32> to vector<8x8xf32>
    %12 = arith.subf %8, %11 : vector<8x8xf32>
    %13 = math.exp %12 : vector<8x8xf32>
    %cst_12 = arith.constant dense<0.000000e+00> : vector<8xf32>
    %14 = vector.multi_reduction <add>, %13, %cst_12 [1] : vector<8x8xf32> to vector<8xf32>
    %15 = vector.shape_cast %14 : vector<8xf32> to vector<8x1xf32>
    %16 = tpu.reciprocal %15 : vector<8x1xf32> -> vector<8x1xf32>
    %17 = vector.broadcast %16 : vector<8x1xf32> to vector<8x8xf32>
    %18 = arith.mulf %13, %17 : vector<8x8xf32>
    %cst_13 = arith.constant dense<0.000000e+00> : vector<8x16xf32>
    %19 = tpu.matmul %18, %7, %cst_13 {dimension_numbers = #tpu.dot_dimension_numbers<[1], [0], [0], [1], [0, 0, 1, 1], [], []>} : vector<8x8xf32>, vector<8x16xf32>, vector<8x16xf32> -> vector<8x16xf32>
    %c0_14 = arith.constant 0 : index
    %c0_15 = arith.constant 0 : index
    %20 = vector.load %arg7[%c0_14, %c0_15] : memref<8x64xf32, #tpu.memory_space<vmem>>, vector<8x16xf32>
    tpu.vector_store %arg7[%c0_14, %c0_15], %19 {strides = array<i32>} : memref<8x64xf32, #tpu.memory_space<vmem>>, vector<8x16xf32>,
    %c0_16 = arith.constant 0 : index
    %c16 = arith.constant 16 : index
    %21 = vector.load %arg6[%c0_16, %c16] : memref<8x192xf32, #tpu.memory_space<vmem>>, vector<8x16xf32>
    %c0_17 = arith.constant 0 : index
    %c80 = arith.constant 80 : index
    %22 = vector.load %arg6[%c0_17, %c80] : memref<8x192xf32, #tpu.memory_space<vmem>>, vector<8x16xf32>
    %c0_18 = arith.constant 0 : index
    %c144 = arith.constant 144 : index
    %23 = vector.load %arg6[%c0_18, %c144] : memref<8x192xf32, #tpu.memory_space<vmem>>, vector<8x16xf32>
    %cst_19 = arith.constant dense<0.000000e+00> : vector<8x8xf32>
    %24 = tpu.matmul %21, %22, %cst_19 {dimension_numbers = #tpu.dot_dimension_numbers<[1], [1], [0], [0], [0, 0, 1, 0], [], []>} : vector<8x16xf32>, vector<8x16xf32>, vector<8x8xf32> -> vector<8x8xf32>
    %cst_20 = arith.constant dense<0xFF800000> : vector<8xf32>
    %25 = vector.multi_reduction <maximumf>, %24, %cst_20 [1] : vector<8x8xf32> to vector<8xf32>
    %26 = vector.shape_cast %25 : vector<8xf32> to vector<8x1xf32>
    %27 = vector.broadcast %26 : vector<8x1xf32> to vector<8x8xf32>
    %28 = arith.subf %24, %27 : vector<8x8xf32>
    %29 = math.exp %28 : vector<8x8xf32>
    %cst_21 = arith.constant dense<0.000000e+00> : vector<8xf32>
    %30 = vector.multi_reduction <add>, %29, %cst_21 [1] : vector<8x8xf32> to vector<8xf32>
    %31 = vector.shape_cast %30 : vector<8xf32> to vector<8x1xf32>
    %32 = tpu.reciprocal %31 : vector<8x1xf32> -> vector<8x1xf32>
    %33 = vector.broadcast %32 : vector<8x1xf32> to vector<8x8xf32>
    %34 = arith.mulf %29, %33 : vector<8x8xf32>
    %cst_22 = arith.constant dense<0.000000e+00> : vector<8x16xf32>
    %35 = tpu.matmul %34, %23, %cst_22 {dimension_numbers = #tpu.dot_dimension_numbers<[1], [0], [0], [1], [0, 0, 1, 1], [], []>} : vector<8x8xf32>, vector<8x16xf32>, vector<8x16xf32> -> vector<8x16xf32>
    %c0_23 = arith.constant 0 : index
    %c16_24 = arith.constant 16 : index
    %36 = vector.load %arg7[%c0_23, %c16_24] : memref<8x64xf32, #tpu.memory_space<vmem>>, vector<8x16xf32>
    tpu.vector_store %arg7[%c0_23, %c16_24], %35 {strides = array<i32>} : memref<8x64xf32, #tpu.memory_space<vmem>>, vector<8x16xf32>,
    %c0_25 = arith.constant 0 : index
    %c32 = arith.constant 32 : index
    %37 = vector.load %arg6[%c0_25, %c32] : memref<8x192xf32, #tpu.memory_space<vmem>>, vector<8x16xf32>
    %c0_26 = arith.constant 0 : index
    %c96 = arith.constant 96 : index
    %38 = vector.load %arg6[%c0_26, %c96] : memref<8x192xf32, #tpu.memory_space<vmem>>, vector<8x16xf32>
    %c0_27 = arith.constant 0 : index
    %c160 = arith.constant 160 : index
    %39 = vector.load %arg6[%c0_27, %c160] : memref<8x192xf32, #tpu.memory_space<vmem>>, vector<8x16xf32>
    %cst_28 = arith.constant dense<0.000000e+00> : vector<8x8xf32>
    %40 = tpu.matmul %37, %38, %cst_28 {dimension_numbers = #tpu.dot_dimension_numbers<[1], [1], [0], [0], [0, 0, 1, 0], [], []>} : vector<8x16xf32>, vector<8x16xf32>, vector<8x8xf32> -> vector<8x8xf32>
    %cst_29 = arith.constant dense<0xFF800000> : vector<8xf32>
    %41 = vector.multi_reduction <maximumf>, %40, %cst_29 [1] : vector<8x8xf32> to vector<8xf32>
    %42 = vector.shape_cast %41 : vector<8xf32> to vector<8x1xf32>
    %43 = vector.broadcast %42 : vector<8x1xf32> to vector<8x8xf32>
    %44 = arith.subf %40, %43 : vector<8x8xf32>
    %45 = math.exp %44 : vector<8x8xf32>
    %cst_30 = arith.constant dense<0.000000e+00> : vector<8xf32>
    %46 = vector.multi_reduction <add>, %45, %cst_30 [1] : vector<8x8xf32> to vector<8xf32>
    %47 = vector.shape_cast %46 : vector<8xf32> to vector<8x1xf32>
    %48 = tpu.reciprocal %47 : vector<8x1xf32> -> vector<8x1xf32>
    %49 = vector.broadcast %48 : vector<8x1xf32> to vector<8x8xf32>
    %50 = arith.mulf %45, %49 : vector<8x8xf32>
    %cst_31 = arith.constant dense<0.000000e+00> : vector<8x16xf32>
    %51 = tpu.matmul %50, %39, %cst_31 {dimension_numbers = #tpu.dot_dimension_numbers<[1], [0], [0], [1], [0, 0, 1, 1], [], []>} : vector<8x8xf32>, vector<8x16xf32>, vector<8x16xf32> -> vector<8x16xf32>
    %c0_32 = arith.constant 0 : index
    %c32_33 = arith.constant 32 : index
    %52 = vector.load %arg7[%c0_32, %c32_33] : memref<8x64xf32, #tpu.memory_space<vmem>>, vector<8x16xf32>
    tpu.vector_store %arg7[%c0_32, %c32_33], %51 {strides = array<i32>} : memref<8x64xf32, #tpu.memory_space<vmem>>, vector<8x16xf32>,
    %c0_34 = arith.constant 0 : index
    %c48 = arith.constant 48 : index
    %53 = vector.load %arg6[%c0_34, %c48] : memref<8x192xf32, #tpu.memory_space<vmem>>, vector<8x16xf32>
    %c0_35 = arith.constant 0 : index
    %c112 = arith.constant 112 : index
    %54 = vector.load %arg6[%c0_35, %c112] : memref<8x192xf32, #tpu.memory_space<vmem>>, vector<8x16xf32>
    %c0_36 = arith.constant 0 : index
    %c176 = arith.constant 176 : index
    %55 = vector.load %arg6[%c0_36, %c176] : memref<8x192xf32, #tpu.memory_space<vmem>>, vector<8x16xf32>
    %cst_37 = arith.constant dense<0.000000e+00> : vector<8x8xf32>
    %56 = tpu.matmul %53, %54, %cst_37 {dimension_numbers = #tpu.dot_dimension_numbers<[1], [1], [0], [0], [0, 0, 1, 0], [], []>} : vector<8x16xf32>, vector<8x16xf32>, vector<8x8xf32> -> vector<8x8xf32>
    %cst_38 = arith.constant dense<0xFF800000> : vector<8xf32>
    %57 = vector.multi_reduction <maximumf>, %56, %cst_38 [1] : vector<8x8xf32> to vector<8xf32>
    %58 = vector.shape_cast %57 : vector<8xf32> to vector<8x1xf32>
    %59 = vector.broadcast %58 : vector<8x1xf32> to vector<8x8xf32>
    %60 = arith.subf %56, %59 : vector<8x8xf32>
    %61 = math.exp %60 : vector<8x8xf32>
    %cst_39 = arith.constant dense<0.000000e+00> : vector<8xf32>
    %62 = vector.multi_reduction <add>, %61, %cst_39 [1] : vector<8x8xf32> to vector<8xf32>
    %63 = vector.shape_cast %62 : vector<8xf32> to vector<8x1xf32>
    %64 = tpu.reciprocal %63 : vector<8x1xf32> -> vector<8x1xf32>
    %65 = vector.broadcast %64 : vector<8x1xf32> to vector<8x8xf32>
    %66 = arith.mulf %61, %65 : vector<8x8xf32>
    %cst_40 = arith.constant dense<0.000000e+00> : vector<8x16xf32>
    %67 = tpu.matmul %66, %55, %cst_40 {dimension_numbers = #tpu.dot_dimension_numbers<[1], [0], [0], [1], [0, 0, 1, 1], [], []>} : vector<8x8xf32>, vector<8x16xf32>, vector<8x16xf32> -> vector<8x16xf32>
    %c0_41 = arith.constant 0 : index
    %c48_42 = arith.constant 48 : index
    %68 = vector.load %arg7[%c0_41, %c48_42] : memref<8x64xf32, #tpu.memory_space<vmem>>, vector<8x16xf32>
    tpu.vector_store %arg7[%c0_41, %c48_42], %67 {strides = array<i32>} : memref<8x64xf32, #tpu.memory_space<vmem>>, vector<8x16xf32>,
    %c0_43 = arith.constant 0 : index
    %c0_44 = arith.constant 0 : index
    %69 = vector.load %arg7[%c0_43, %c0_44] : memref<8x64xf32, #tpu.memory_space<vmem>>, vector<8x64xf32>
    %c0_45 = arith.constant 0 : index
    %c0_46 = arith.constant 0 : index
    %70 = vector.load %arg3[%c0_45, %c0_46] : memref<64x32xf32, #tpu.memory_space<vmem>>, vector<64x32xf32>
    %cst_47 = arith.constant dense<0.000000e+00> : vector<8x32xf32>
    %71 = tpu.matmul %69, %70, %cst_47 {dimension_numbers = #tpu.dot_dimension_numbers<[1], [0], [0], [1], [0, 0, 1, 1], [], []>} : vector<8x64xf32>, vector<64x32xf32>, vector<8x32xf32> -> vector<8x32xf32>
    %c0_48 = arith.constant 0 : index
    %c0_49 = arith.constant 0 : index
    %72 = vector.load %arg4[%c0_48, %c0_49] : memref<1x32xf32, #tpu.memory_space<vmem>>, vector<1x32xf32>
    %73 = vector.broadcast %72 : vector<1x32xf32> to vector<8x32xf32>
    %74 = arith.addf %71, %73 : vector<8x32xf32>
    %c0_50 = arith.constant 0 : index
    %c0_51 = arith.constant 0 : index
    %c0_52 = arith.constant 0 : index
    %75 = vector.load %arg5[%c0_50, %c0_51, %c0_52] : memref<1x8x32xf32, #tpu.memory_space<vmem>>, vector<1x8x32xf32>
    %76 = vector.shape_cast %75 : vector<1x8x32xf32> to vector<8x32xf32>
    %77 = vector.shape_cast %74 : vector<8x32xf32> to vector<1x8x32xf32>
    tpu.vector_store %arg5[%c0_50, %c0_51, %c0_52], %77 {strides = array<i32>} : memref<1x8x32xf32, #tpu.memory_space<vmem>>, vector<1x8x32xf32>,
    return
  }
  func.func @transform_0(%arg0: i32) -> (i32, i32, i32) {
    %c0_i32 = arith.constant 0 : i32
    %c0_i32_0 = arith.constant 0 : i32
    %c0_i32_1 = arith.constant 0 : i32
    return %arg0, %c0_i32, %c0_i32_0 : i32, i32, i32
  }
  func.func @transform_1(%arg0: i32) -> (i32, i32) {
    %c0_i32 = arith.constant 0 : i32
    %c0_i32_0 = arith.constant 0 : i32
    %c0_i32_1 = arith.constant 0 : i32
    return %c0_i32, %c0_i32_0 : i32, i32
  }
  func.func @transform_2(%arg0: i32) -> (i32, i32) {
    %c0_i32 = arith.constant 0 : i32
    %c0_i32_0 = arith.constant 0 : i32
    %c0_i32_1 = arith.constant 0 : i32
    return %c0_i32, %c0_i32_0 : i32, i32
  }
  func.func @transform_3(%arg0: i32) -> (i32, i32) {
    %c0_i32 = arith.constant 0 : i32
    %c0_i32_0 = arith.constant 0 : i32
    %c0_i32_1 = arith.constant 0 : i32
    return %c0_i32, %c0_i32_0 : i32, i32
  }
  func.func @transform_4(%arg0: i32) -> (i32, i32, i32) {
    %c0_i32 = arith.constant 0 : i32
    %c0_i32_0 = arith.constant 0 : i32
    %c0_i32_1 = arith.constant 0 : i32
    return %arg0, %c0_i32, %c0_i32_0 : i32, i32, i32
  }
}

</mosaic_0001>

<llo_original>
// kernel: tpu_custom_call.1
$region0: #{tpu_custom_call.1}
  #allocation0 [shape = 'u32[]', space=smem, size = 0x4, offset = 0x4, fixed_abs, tag = 'smem constant byte address 0x4 - core index']
  #allocation1 [shape = 'u32[144,128]{1,0:T(1,128)}', space=vmem, size = 0x12000, scoped, tag = 'internal scratch']
  #allocation2 [shape = 'f32[8,192]{1,0:T(8,128)}', space=vmem, size = 0x2000, scoped, tag = 'scratch operand']
  #allocation3 [shape = 'f32[8,64]{1,0:T(8,128)}', space=vmem, size = 0x1000, scoped, tag = 'scratch operand']
  %s0 = inlined_call_operand.vmem [shape: f32[2,8,32], index: 0, kind: input, shape index: {}]
  %s1 = inlined_call_operand.vmem [shape: f32[32,192], index: 1, kind: input, shape index: {}]
  %s2 = inlined_call_operand.vmem [shape: f32[64,32], index: 2, kind: input, shape index: {}]
  %s3 = inlined_call_operand.vmem [shape: f32[1,32], index: 3, kind: input, shape index: {}]
  %s4 = inlined_call_operand.hbm [shape: f32[2,8,32], index: 4, kind: output, shape index: {}]
  %s5 = sld [smem:[#allocation0]]
  $region49: #{tpu_custom_call.1} parent=0
    _
  %s7 = ssub.s32 1, %s5
  %s8 = scalar_select 0, %s7, %s5
  $region1: #{tpu_custom_call.1} parent=0
    #allocation4 [shape = 'u8[8192]{0}', space=vmem, size = 0x2000, scoped, tag = 'output window, operand 0']
    #allocation5 [shape = 's32[2]{0}', space=sflag, size = 0x8, scoped, tag = 'scoped memory for tpu_custom_call.1']
    %9 = vsyncpa [#allocation5], 0
    %s10 = scalar_lea.sflag [#allocation5], 1
    %11 = vsyncpa %s10, 0
    loop: start=0, step=1, limit=4
    $region2: #{tpu_custom_call.1} parent=1 // loop_pre_header
      _
    $region3: #{tpu_custom_call.1} parent=1 // loop_header
      %s13 = sphi 0, %s17
      %p14 = scmp.ge.s32.totalorder %s13, 4
      %s23 = sphi 0, %s25
      %s26 = sphi 0, %s23
      %s27 = sphi 0, %s26
      %s43 = sphi 0, %s27
      %s47 = sphi 0, %s47
      %s49 = sphi 0, %s47
      %s50 = sphi 0, %s49
      %s64 = sphi 0, %s50
      %s68 = sphi 0, %s68
      %s70 = sphi 0, %s68
      %s71 = sphi 0, %s70
      %s85 = sphi 0, %s71
      %s89 = sphi 0, %s89
      %s91 = sphi 0, %s89
      %s92 = sphi 0, %s91
      %s106 = sphi 0, %s92
      %s112 = sphi 0, %s114
      %s115 = sphi 0, %s112
      %s116 = sphi 0, %s115
      %s132 = sphi 0, %s116
    $region4: #{tpu_custom_call.1} parent=1 // loop_header_branch
      %16 = sbr.rel (%p14) target = $region8
    $region5: #{tpu_custom_call.1} parent=1 // loop_body
      %s18 = ssub.s32 %s13, 1
      %s19 = ssub.s32 %s13, 2
      %s20 = sadd.s32 %s13, 1
      %s21 = ssub.s32 %s13, %s20
      %p22 = scmp.eq.s32.totalorder %s21, 0
      %s24 = sadd.s32 %s23, 1
      %s25 = scalar_select %p22, %s23, %s24
      %p28 = pneg %p22
      %p29 = scmp.eq.s32.totalorder %s13, 1
      %p30 = por %p28, %p29
      %p31 = scmp.ne.s32.totalorder %s23, %s26
      %p32 = scmp.eq.s32.totalorder %s13, 0
      %p33 = por %p31, %p32
      %p34 = scmp.ne.s32.totalorder %s23, %s26
      %p35 = scmp.eq.s32.totalorder %s18, 1
      %p36 = por %p34, %p35
      %p37 = scmp.ne.s32.totalorder %s26, %s27
      %p38 = scmp.eq.s32.totalorder %s18, 0
      %p39 = por %p37, %p38
      %p40 = scmp.ne.s32.totalorder %s26, %s27
      %p41 = scmp.eq.s32.totalorder %s19, 1
      %p42 = por %p40, %p41
      %p44 = scmp.ne.s32.totalorder %s27, %s43
      %p45 = scmp.eq.s32.totalorder %s19, 0
      %p46 = por %p44, %p45
      %s48 = sadd.s32 %s47, 1
      %p51 = scmp.eq.s32.totalorder %s13, 1
      %p52 = scmp.ne.s32.totalorder %s47, %s49
      %p53 = scmp.eq.s32.totalorder %s13, 0
      %p54 = por %p52, %p53
      %p55 = scmp.ne.s32.totalorder %s47, %s49
      %p56 = scmp.eq.s32.totalorder %s18, 1
      %p57 = por %p55, %p56
      %p58 = scmp.ne.s32.totalorder %s49, %s50
      %p59 = scmp.eq.s32.totalorder %s18, 0
      %p60 = por %p58, %p59
      %p61 = scmp.ne.s32.totalorder %s49, %s50
      %p62 = scmp.eq.s32.totalorder %s19, 1
      %p63 = por %p61, %p62
      %p65 = scmp.ne.s32.totalorder %s50, %s64
      %p66 = scmp.eq.s32.totalorder %s19, 0
      %p67 = por %p65, %p66
      %s69 = sadd.s32 %s68, 1
      %p72 = scmp.eq.s32.totalorder %s13, 1
      %p73 = scmp.ne.s32.totalorder %s68, %s70
      %p74 = scmp.eq.s32.totalorder %s13, 0
      %p75 = por %p73, %p74
      %p76 = scmp.ne.s32.totalorder %s68, %s70
      %p77 = scmp.eq.s32.totalorder %s18, 1
      %p78 = por %p76, %p77
      %p79 = scmp.ne.s32.totalorder %s70, %s71
      %p80 = scmp.eq.s32.totalorder %s18, 0
      %p81 = por %p79, %p80
      %p82 = scmp.ne.s32.totalorder %s70, %s71
      %p83 = scmp.eq.s32.totalorder %s19, 1
      %p84 = por %p82, %p83
      %p86 = scmp.ne.s32.totalorder %s71, %s85
      %p87 = scmp.eq.s32.totalorder %s19, 0
      %p88 = por %p86, %p87
      %s90 = sadd.s32 %s89, 1
      %p93 = scmp.eq.s32.totalorder %s13, 1
      %p94 = scmp.ne.s32.totalorder %s89, %s91
      %p95 = scmp.eq.s32.totalorder %s13, 0
      %p96 = por %p94, %p95
      %p97 = scmp.ne.s32.totalorder %s89, %s91
      %p98 = scmp.eq.s32.totalorder %s18, 1
      %p99 = por %p97, %p98
      %p100 = scmp.ne.s32.totalorder %s91, %s92
      %p101 = scmp.eq.s32.totalorder %s18, 0
      %p102 = por %p100, %p101
      %p103 = scmp.ne.s32.totalorder %s91, %s92
      %p104 = scmp.eq.s32.totalorder %s19, 1
      %p105 = por %p103, %p104
      %p107 = scmp.ne.s32.totalorder %s92, %s106
      %p108 = scmp.eq.s32.totalorder %s19, 0
      %p109 = por %p107, %p108
      %s110 = ssub.s32 %s13, %s20
      %p111 = scmp.eq.s32.totalorder %s110, 0
      %s113 = sadd.s32 %s112, 1
      %s114 = scalar_select %p111, %s112, %s113
      %p117 = pneg %p111
      %p118 = scmp.eq.s32.totalorder %s13, 1
      %p119 = por %p117, %p118
      %p120 = scmp.ne.s32.totalorder %s112, %s115
      %p121 = scmp.eq.s32.totalorder %s13, 0
      %p122 = por %p120, %p121
      %p123 = scmp.ne.s32.totalorder %s112, %s115
      %p124 = scmp.eq.s32.totalorder %s18, 1
      %p125 = por %p123, %p124
      %p126 = scmp.ne.s32.totalorder %s115, %s116
      %p127 = scmp.eq.s32.totalorder %s18, 0
      %p128 = por %p126, %p127
      %p129 = scmp.ne.s32.totalorder %s115, %s116
      %p130 = scmp.eq.s32.totalorder %s19, 1
      %p131 = por %p129, %p130
      %p133 = scmp.ne.s32.totalorder %s116, %s132
      %p134 = scmp.eq.s32.totalorder %s19, 0
      %p135 = por %p133, %p134
      %p136 = scmp.le.s32.totalorder 1, %s13
      %p137 = scmp.lt.s32.totalorder %s13, 3
      %p138 = pnand %p136, %p137
      %p139 = pneg %p138
      // Predicated region
      $region9: #{tpu_custom_call.1} parent=5 // pred_check
        _
      $region10: #{tpu_custom_call.1} parent=5 // pred_check_branch
        %141 = sbr.rel (%p138) target = $region12
      $region11: #{tpu_custom_call.1} parent=5 // pred_region
        %s142 = ssub.s32 %s13, 1
        // Predicated region
        $region13: #{tpu_custom_call.1} parent=11 // pred_check
          %p143 = pneg %p60
        $region14: #{tpu_custom_call.1} parent=11 // pred_check_branch
          %145 = sbr.rel (%p143) target = $region16
        $region15: #{tpu_custom_call.1} parent=11 // pred_region
          _
        $region16: #{tpu_custom_call.1} parent=11 // pred_fallthru
          _
        // Predicated region
        $region17: #{tpu_custom_call.1} parent=11 // pred_check
          %p146 = pneg %p81
        $region18: #{tpu_custom_call.1} parent=11 // pred_check_branch
          %148 = sbr.rel (%p146) target = $region20
        $region19: #{tpu_custom_call.1} parent=11 // pred_region
          _
        $region20: #{tpu_custom_call.1} parent=11 // pred_fallthru
          _
        // Predicated region
        $region21: #{tpu_custom_call.1} parent=11 // pred_check
          %p149 = pneg %p102
        $region22: #{tpu_custom_call.1} parent=11 // pred_check_branch
          %151 = sbr.rel (%p149) target = $region24
        $region23: #{tpu_custom_call.1} parent=11 // pred_region
          _
        $region24: #{tpu_custom_call.1} parent=11 // pred_fallthru
          _
      $region12: #{tpu_custom_call.1} parent=5 // pred_fallthru
        _
      %p152 = scmp.lt.s32.totalorder %s13, 2
      // Predicated region
      $region25: #{tpu_custom_call.1} parent=5 // pred_check
        %p153 = pneg %p152
      $region26: #{tpu_custom_call.1} parent=5 // pred_check_branch
        %155 = sbr.rel (%p153) target = $region28
      $region27: #{tpu_custom_call.1} parent=5 // pred_region
        // Predicated region
        $region29: #{tpu_custom_call.1} parent=27 // pred_check
          %p156 = pneg %p33
        $region30: #{tpu_custom_call.1} parent=27 // pred_check_branch
          %158 = sbr.rel (%p156) target = $region32
        $region31: #{tpu_custom_call.1} parent=27 // pred_region
          %p159 = scmp.lt.s32.totalorder %s13, 1
          %s160 = scalar_select %p159, %s13, 1
          %s161 = smul.addr %s160, 8
          %s162 = scalar_lea.vmem %s0, %s161
        $region32: #{tpu_custom_call.1} parent=27 // pred_fallthru
          _
      $region28: #{tpu_custom_call.1} parent=5 // pred_fallthru
        _
      %p163 = scmp.le.s32.totalorder 1, %s13
      %p164 = scmp.lt.s32.totalorder %s13, 3
      %p165 = pnand %p163, %p164
      %p166 = pneg %p165
      // Predicated region
      $region33: #{tpu_custom_call.1} parent=5 // pred_check
        _
      $region34: #{tpu_custom_call.1} parent=5 // pred_check_branch
        %168 = sbr.rel (%p165) target = $region36
      $region35: #{tpu_custom_call.1} parent=5 // pred_region
        %s169 = ssub.s32 %s13, 1
        %p170 = scmp.lt.s32.totalorder %s18, 1
        %s171 = scalar_select %p170, %s18, 1
        %s172 = smul.addr %s171, 8
        %s173 = scalar_lea.vmem %s0, %s172
        %p174 = pneg %p39
        %p175 = pneg %p36
        %p176 = pneg %p60
        %p177 = pneg %p57
        %p178 = pneg %p81
        %p179 = pneg %p78
        %p180 = pneg %p102
        %p181 = pneg %p99
        %p182 = pneg %p128
        %p183 = pneg %p125
        %s184 = sand.u32 %s115, 1
        %s185 = scalar_lea.sflag [#allocation5], %s184
        %s186 = sand.u32 %s115, 1
        %s187 = smul.addr %s186, 8
        %s188 = scalar_lea.vmem [#allocation4], %s187
        %p189 = scmp.lt.s32.totalorder %s18, 1
        %s190 = scalar_select %p189, %s18, 1
        %s191 = smul.addr %s190, 8
        %s192 = scalar_lea.vmem %s0, %s191
        %v193 = vld [vmem:[%s192] sm:$0xff]
        %v194 = vld [vmem:[%s1] sm:$0xff]
        %v195 = vld [vmem:[%s1 + $0x8] sm:$0xff]
        %v196 = vld [vmem:[%s1 + $0x10] sm:$0xff]
        %v197 = vld [vmem:[%s1 + $0x18] sm:$0xff]
        %v198 = vld [vmem:[%s1 + $0x20] sm:$0xff]
        %v199 = vld [vmem:[%s1 + $0x28] sm:$0xff]
        %v200 = vld [vmem:[%s1 + $0x30] sm:$0xff]
        %v201 = vld [vmem:[%s1 + $0x38] sm:$0xff]
        %vm202 = vcmask 261120
        %v204 = vsel %vm202, %v193, 0
        %206 = vmatprep.subr.mxu0 0.0
        %207 = vmatpush1.msra.mxu0 0.0
        %208 = vmatprep.subr.mxu0 0.0
        %209 = vmatpush1.msra.mxu0 0.0
        %210 = vmatprep.subr.mxu0 0.0
        %211 = vmatpush1.msra.mxu0 0.0
        %212 = vmatprep.subr.mxu0 0.0
        %213 = vmatpush1.msra.mxu0 0.0
        %214 = vmatprep.subr.mxu0 0.0
        %215 = vmatpush1.msra.mxu0 0.0
        %216 = vmatprep.subr.mxu0 0.0
        %217 = vmatpush1.msra.mxu0 0.0
        %218 = vmatprep.subr.mxu0 0.0
        %219 = vmatpush1.msra.mxu0 0.0
        %220 = vmatprep.subr.mxu0 0.0
        %221 = vmatpush1.msra.mxu0 0.0
        %222 = vmatprep.subr.mxu0 0.0
        %223 = vmatpush1.msra.mxu0 0.0
        %224 = vmatprep.subr.mxu0 0.0
        %225 = vmatpush1.msra.mxu0 0.0
        %226 = vmatprep.subr.mxu0 0.0
        %227 = vmatpush1.msra.mxu0 0.0
        %228 = vmatprep.subr.mxu0 0.0
        %229 = vmatpush1.msra.mxu0 0.0
        %230 = vmatprep.subr.mxu0 %v201
        %231 = vmatpush1.msra.mxu0 %v200
        %232 = vmatprep.subr.mxu0 %v199
        %233 = vmatpush1.msra.mxu0 %v198
        %234 = vmatprep.subr.mxu0 %v197
        %235 = vmatpush1.msra.mxu0 %v196
        %236 = vmatprep.subr.mxu0 %v195
        %237 = vmatpush1.msra.mxu0 %v194
        %238 = vmatprep.subr.mxu0 0.0
        %239 = vmatpush2.msra.mxu0 0.0
        %240 = vmatprep.subr.mxu0 0.0
        %241 = vmatpush2.msra.mxu0 0.0
        %242 = vmatprep.subr.mxu0 0.0
        %243 = vmatpush2.msra.mxu0 0.0
        %244 = vmatprep.subr.mxu0 0.0
        %245 = vmatpush2.msra.mxu0 0.0
        %246 = vmatprep.subr.mxu0 0.0
        %247 = vmatpush2.msra.mxu0 0.0
        %248 = vmatprep.subr.mxu0 0.0
        %249 = vmatpush2.msra.mxu0 0.0
        %250 = vmatprep.subr.mxu0 0.0
        %251 = vmatpush2.msra.mxu0 0.0
        %252 = vmatprep.subr.mxu0 0.0
        %253 = vmatpush2.msra.mxu0 0.0
        %254 = vmatprep.subr.mxu0 0.0
        %255 = vmatpush2.msra.mxu0 0.0
        %256 = vmatprep.subr.mxu0 0.0
        %257 = vmatpush2.msra.mxu0 0.0
        %258 = vmatprep.subr.mxu0 0.0
        %259 = vmatpush2.msra.mxu0 0.0
        %260 = vmatprep.subr.mxu0 0.0
        %261 = vmatpush2.msra.mxu0 0.0
        %262 = vmatprep.subr.mxu0 0.0
        %263 = vmatpush2.msra.mxu0 0.0
        %264 = vmatprep.subr.mxu0 0.0
        %265 = vmatpush2.msra.mxu0 0.0
        %266 = vmatprep.subr.mxu0 0.0
        %267 = vmatpush2.msra.mxu0 0.0
        %268 = vmatprep.subr.mxu0 0.0
        %269 = vmatpush2.msra.mxu0 0.0
        %270 = vmatprep.mubr.f32.mxu0 0.0
        %271 = vmatmul.mubr.f32.gmra.mxu0 %v204
        %v272 = vpop.f32.mrf.mxu0
        %v273 = vadd.f32 0.0, %v272
        %v274 = vpop.f32.mrf.mxu0
        %v275 = vadd.f32 0.0, %v274
        %276 = vdwg.mxu0
        %277 = vst [vmem:[#allocation2] sm:$0xff] %v273
        %vm278 = vcmask 523264
        %279 = vst.msk [vmem:[#allocation2 + $0x8] sm:$0xff] %vm278, %v275
        %v280 = vld [vmem:[#allocation2] sm:$0xff]
        %v281 = vld [vmem:[#allocation2 + $0x8] sm:$0xff]
        %283 = vrot.lane.b32.xlu0 %v280, 64
        %v284 = vpop.permute.xlu0 %283
        %vm285 = vcmask 130048
        %v286 = vsel %vm285, %v280, 0
        %v288 = vsel %vm285, %v284, 0
        %290 = vmatprep.subr.mxu0 0.0
        %291 = vmatpush1.xpose.msra.mxu0 0.0
        %292 = vmatprep.subr.mxu0 0.0
        %293 = vmatpush1.xpose.msra.mxu0 0.0
        %294 = vmatprep.subr.mxu0 0.0
        %295 = vmatpush1.xpose.msra.mxu0 0.0
        %296 = vmatprep.subr.mxu0 0.0
        %297 = vmatpush1.xpose.msra.mxu0 0.0
        %298 = vmatprep.subr.mxu0 0.0
        %299 = vmatpush1.xpose.msra.mxu0 0.0
        %300 = vmatprep.subr.mxu0 0.0
        %301 = vmatpush1.xpose.msra.mxu0 0.0
        %302 = vmatprep.subr.mxu0 0.0
        %303 = vmatpush1.xpose.msra.mxu0 0.0
        %304 = vmatprep.subr.mxu0 0.0
        %305 = vmatpush1.xpose.msra.mxu0 0.0
        %306 = vmatprep.subr.mxu0 0.0
        %307 = vmatpush1.xpose.msra.mxu0 0.0
        %308 = vmatprep.subr.mxu0 0.0
        %309 = vmatpush1.xpose.msra.mxu0 0.0
        %310 = vmatprep.subr.mxu0 0.0
        %311 = vmatpush1.xpose.msra.mxu0 0.0
        %312 = vmatprep.subr.mxu0 0.0
        %313 = vmatpush1.xpose.msra.mxu0 0.0
        %314 = vmatprep.subr.mxu0 0.0
        %315 = vmatpush1.xpose.msra.mxu0 0.0
        %316 = vmatprep.subr.mxu0 0.0
        %317 = vmatpush1.xpose.msra.mxu0 0.0
        %318 = vmatprep.subr.mxu0 0.0
        %319 = vmatpush1.xpose.msra.mxu0 0.0
        %320 = vmatprep.subr.mxu0 0.0
        %321 = vmatpush1.xpose.msra.mxu0 %v288
        %322 = vmatprep.subr.mxu0 0.0
        %323 = vmatpush2.xpose.msra.mxu0 0.0
        %324 = vmatprep.subr.mxu0 0.0
        %325 = vmatpush2.xpose.msra.mxu0 0.0
        %326 = vmatprep.subr.mxu0 0.0
        %327 = vmatpush2.xpose.msra.mxu0 0.0
        %328 = vmatprep.subr.mxu0 0.0
        %329 = vmatpush2.xpose.msra.mxu0 0.0
        %330 = vmatprep.subr.mxu0 0.0
        %331 = vmatpush2.xpose.msra.mxu0 0.0
        %332 = vmatprep.subr.mxu0 0.0
        %333 = vmatpush2.xpose.msra.mxu0 0.0
        %334 = vmatprep.subr.mxu0 0.0
        %335 = vmatpush2.xpose.msra.mxu0 0.0
        %336 = vmatprep.subr.mxu0 0.0
        %337 = vmatpush2.xpose.msra.mxu0 0.0
        %338 = vmatprep.subr.mxu0 0.0
        %339 = vmatpush2.xpose.msra.mxu0 0.0
        %340 = vmatprep.subr.mxu0 0.0
        %341 = vmatpush2.xpose.msra.mxu0 0.0
        %342 = vmatprep.subr.mxu0 0.0
        %343 = vmatpush2.xpose.msra.mxu0 0.0
        %344 = vmatprep.subr.mxu0 0.0
        %345 = vmatpush2.xpose.msra.mxu0 0.0
        %346 = vmatprep.subr.mxu0 0.0
        %347 = vmatpush2.xpose.msra.mxu0 0.0
        %348 = vmatprep.subr.mxu0 0.0
        %349 = vmatpush2.xpose.msra.mxu0 0.0
        %350 = vmatprep.subr.mxu0 0.0
        %351 = vmatpush2.xpose.msra.mxu0 0.0
        %352 = vmatprep.subr.mxu0 0.0
        %353 = vmatpush2.xpose.msra.mxu0 0.0
        %354 = vmatprep.mubr.f32.mxu0 0.0
        %355 = vmatmul.mubr.f32.gmra.mxu0 %v286
        %v356 = vpop.f32.mrf.mxu0
        %v357 = vadd.f32 0.0, %v356
        %v358 = vpop.f32.mrf.mxu0
        %359 = vdwg.mxu0
        %vm360 = vcmask 64512
        %v361 = vsel %vm360, %v357, -inf
        %362 = vmax.xlane.f32.xlu0 %v361
        %v363 = vpop.xlane.xlu0 %362
        %v364 = vsub.f32 %v357, %v363
        %v365 = vmul.f32 %v364, 1.442695
        %v366 = vpow.pop %v365
        %v367 = vsel %vm360, %v366, 0.0
        %368 = vadd.xlane.f32.xlu0 %v367
        %v369 = vpop.xlane.xlu0 %368
        %v370 = vrcp.pop %v369
        %v371 = vmul.f32 %v366, %v370
        %v373 = vsel %vm360, %v371, 0
        %375 = vmatprep.subr.mxu0 0.0
        %376 = vmatpush1.msra.mxu0 0.0
        %377 = vmatprep.subr.mxu0 0.0
        %378 = vmatpush1.msra.mxu0 0.0
        %379 = vmatprep.subr.mxu0 0.0
        %380 = vmatpush1.msra.mxu0 0.0
        %381 = vmatprep.subr.mxu0 0.0
        %382 = vmatpush1.msra.mxu0 0.0
        %383 = vmatprep.subr.mxu0 0.0
        %384 = vmatpush1.msra.mxu0 0.0
        %385 = vmatprep.subr.mxu0 0.0
        %386 = vmatpush1.msra.mxu0 0.0
        %387 = vmatprep.subr.mxu0 0.0
        %388 = vmatpush1.msra.mxu0 0.0
        %389 = vmatprep.subr.mxu0 0.0
        %390 = vmatpush1.msra.mxu0 0.0
        %391 = vmatprep.subr.mxu0 0.0
        %392 = vmatpush1.msra.mxu0 0.0
        %393 = vmatprep.subr.mxu0 0.0
        %394 = vmatpush1.msra.mxu0 0.0
        %395 = vmatprep.subr.mxu0 0.0
        %396 = vmatpush1.msra.mxu0 0.0
        %397 = vmatprep.subr.mxu0 0.0
        %398 = vmatpush1.msra.mxu0 0.0
        %399 = vmatprep.subr.mxu0 0.0
        %400 = vmatpush1.msra.mxu0 0.0
        %401 = vmatprep.subr.mxu0 0.0
        %402 = vmatpush1.msra.mxu0 0.0
        %403 = vmatprep.subr.mxu0 0.0
        %404 = vmatpush1.msra.mxu0 0.0
        %405 = vmatprep.subr.mxu0 0.0
        %406 = vmatpush1.msra.mxu0 %v281
        %407 = vmatprep.subr.mxu0 0.0
        %408 = vmatpush2.msra.mxu0 0.0
        %409 = vmatprep.subr.mxu0 0.0
        %410 = vmatpush2.msra.mxu0 0.0
        %411 = vmatprep.subr.mxu0 0.0
        %412 = vmatpush2.msra.mxu0 0.0
        %413 = vmatprep.subr.mxu0 0.0
        %414 = vmatpush2.msra.mxu0 0.0
        %415 = vmatprep.subr.mxu0 0.0
        %416 = vmatpush2.msra.mxu0 0.0
        %417 = vmatprep.subr.mxu0 0.0
        %418 = vmatpush2.msra.mxu0 0.0
        %419 = vmatprep.subr.mxu0 0.0
        %420 = vmatpush2.msra.mxu0 0.0
        %421 = vmatprep.subr.mxu0 0.0
        %422 = vmatpush2.msra.mxu0 0.0
        %423 = vmatprep.subr.mxu0 0.0
        %424 = vmatpush2.msra.mxu0 0.0
        %425 = vmatprep.subr.mxu0 0.0
        %426 = vmatpush2.msra.mxu0 0.0
        %427 = vmatprep.subr.mxu0 0.0
        %428 = vmatpush2.msra.mxu0 0.0
        %429 = vmatprep.subr.mxu0 0.0
        %430 = vmatpush2.msra.mxu0 0.0
        %431 = vmatprep.subr.mxu0 0.0
        %432 = vmatpush2.msra.mxu0 0.0
        %433 = vmatprep.subr.mxu0 0.0
        %434 = vmatpush2.msra.mxu0 0.0
        %435 = vmatprep.subr.mxu0 0.0
        %436 = vmatpush2.msra.mxu0 0.0
        %437 = vmatprep.subr.mxu0 0.0
        %438 = vmatpush2.msra.mxu0 0.0
        %439 = vmatprep.mubr.f32.mxu0 0.0
        %440 = vmatmul.mubr.f32.gmra.mxu0 %v373
        %v441 = vpop.f32.mrf.mxu0
        %v442 = vadd.f32 0.0, %v441
        %v443 = vpop.f32.mrf.mxu0
        %444 = vdwg.mxu0
        %445 = vst.msk [vmem:[#allocation3] sm:$0xff] %vm285, %v442
        %v446 = vld [vmem:[#allocation2] sm:$0xff]
        %v447 = vld [vmem:[#allocation2 + $0x8] sm:$0xff]
        %449 = vrot.lane.b32.xlu0 %v446, 112
        %v450 = vpop.permute.xlu0 %449
        %451 = vrot.lane.b32.xlu0 %v446, 48
        %v452 = vpop.permute.xlu0 %451
        %v453 = vsel %vm285, %v450, 0
        %v455 = vsel %vm285, %v452, 0
        %457 = vmatprep.subr.mxu0 0.0
        %458 = vmatpush1.xpose.msra.mxu0 0.0
        %459 = vmatprep.subr.mxu0 0.0
        %460 = vmatpush1.xpose.msra.mxu0 0.0
        %461 = vmatprep.subr.mxu0 0.0
        %462 = vmatpush1.xpose.msra.mxu0 0.0
        %463 = vmatprep.subr.mxu0 0.0
        %464 = vmatpush1.xpose.msra.mxu0 0.0
        %465 = vmatprep.subr.mxu0 0.0
        %466 = vmatpush1.xpose.msra.mxu0 0.0
        %467 = vmatprep.subr.mxu0 0.0
        %468 = vmatpush1.xpose.msra.mxu0 0.0
        %469 = vmatprep.subr.mxu0 0.0
        %470 = vmatpush1.xpose.msra.mxu0 0.0
        %471 = vmatprep.subr.mxu0 0.0
        %472 = vmatpush1.xpose.msra.mxu0 0.0
        %473 = vmatprep.subr.mxu0 0.0
        %474 = vmatpush1.xpose.msra.mxu0 0.0
        %475 = vmatprep.subr.mxu0 0.0
        %476 = vmatpush1.xpose.msra.mxu0 0.0
        %477 = vmatprep.subr.mxu0 0.0
        %478 = vmatpush1.xpose.msra.mxu0 0.0
        %479 = vmatprep.subr.mxu0 0.0
        %480 = vmatpush1.xpose.msra.mxu0 0.0
        %481 = vmatprep.subr.mxu0 0.0
        %482 = vmatpush1.xpose.msra.mxu0 0.0
        %483 = vmatprep.subr.mxu0 0.0
        %484 = vmatpush1.xpose.msra.mxu0 0.0
        %485 = vmatprep.subr.mxu0 0.0
        %486 = vmatpush1.xpose.msra.mxu0 0.0
        %487 = vmatprep.subr.mxu0 0.0
        %488 = vmatpush1.xpose.msra.mxu0 %v455
        %489 = vmatprep.subr.mxu0 0.0
        %490 = vmatpush2.xpose.msra.mxu0 0.0
        %491 = vmatprep.subr.mxu0 0.0
        %492 = vmatpush2.xpose.msra.mxu0 0.0
        %493 = vmatprep.subr.mxu0 0.0
        %494 = vmatpush2.xpose.msra.mxu0 0.0
        %495 = vmatprep.subr.mxu0 0.0
        %496 = vmatpush2.xpose.msra.mxu0 0.0
        %497 = vmatprep.subr.mxu0 0.0
        %498 = vmatpush2.xpose.msra.mxu0 0.0
        %499 = vmatprep.subr.mxu0 0.0
        %500 = vmatpush2.xpose.msra.mxu0 0.0
        %501 = vmatprep.subr.mxu0 0.0
        %502 = vmatpush2.xpose.msra.mxu0 0.0
        %503 = vmatprep.subr.mxu0 0.0
        %504 = vmatpush2.xpose.msra.mxu0 0.0
        %505 = vmatprep.subr.mxu0 0.0
        %506 = vmatpush2.xpose.msra.mxu0 0.0
        %507 = vmatprep.subr.mxu0 0.0
        %508 = vmatpush2.xpose.msra.mxu0 0.0
        %509 = vmatprep.subr.mxu0 0.0
        %510 = vmatpush2.xpose.msra.mxu0 0.0
        %511 = vmatprep.subr.mxu0 0.0
        %512 = vmatpush2.xpose.msra.mxu0 0.0
        %513 = vmatprep.subr.mxu0 0.0
        %514 = vmatpush2.xpose.msra.mxu0 0.0
        %515 = vmatprep.subr.mxu0 0.0
        %516 = vmatpush2.xpose.msra.mxu0 0.0
        %517 = vmatprep.subr.mxu0 0.0
        %518 = vmatpush2.xpose.msra.mxu0 0.0
        %519 = vmatprep.subr.mxu0 0.0
        %520 = vmatpush2.xpose.msra.mxu0 0.0
        %521 = vmatprep.mubr.f32.mxu0 0.0
        %522 = vmatmul.mubr.f32.gmra.mxu0 %v453
        %v523 = vpop.f32.mrf.mxu0
        %v524 = vadd.f32 0.0, %v523
        %v525 = vpop.f32.mrf.mxu0
        %526 = vdwg.mxu0
        %v527 = vsel %vm360, %v524, -inf
        %528 = vmax.xlane.f32.xlu0 %v527
        %v529 = vpop.xlane.xlu0 %528
        %v530 = vsub.f32 %v524, %v529
        %v531 = vmul.f32 %v530, 1.442695
        %v532 = vpow.pop %v531
        %v533 = vsel %vm360, %v532, 0.0
        %534 = vadd.xlane.f32.xlu0 %v533
        %v535 = vpop.xlane.xlu0 %534
        %v536 = vrcp.pop %v535
        %v537 = vmul.f32 %v532, %v536
        %539 = vrot.lane.b32.xlu0 %v447, 112
        %v540 = vpop.permute.xlu0 %539
        %v543 = vsel %vm360, %v537, 0
        %545 = vmatprep.subr.mxu0 0.0
        %546 = vmatpush1.msra.mxu0 0.0
        %547 = vmatprep.subr.mxu0 0.0
        %548 = vmatpush1.msra.mxu0 0.0
        %549 = vmatprep.subr.mxu0 0.0
        %550 = vmatpush1.msra.mxu0 0.0
        %551 = vmatprep.subr.mxu0 0.0
        %552 = vmatpush1.msra.mxu0 0.0
        %553 = vmatprep.subr.mxu0 0.0
        %554 = vmatpush1.msra.mxu0 0.0
        %555 = vmatprep.subr.mxu0 0.0
        %556 = vmatpush1.msra.mxu0 0.0
        %557 = vmatprep.subr.mxu0 0.0
        %558 = vmatpush1.msra.mxu0 0.0
        %559 = vmatprep.subr.mxu0 0.0
        %560 = vmatpush1.msra.mxu0 0.0
        %561 = vmatprep.subr.mxu0 0.0
        %562 = vmatpush1.msra.mxu0 0.0
        %563 = vmatprep.subr.mxu0 0.0
        %564 = vmatpush1.msra.mxu0 0.0
        %565 = vmatprep.subr.mxu0 0.0
        %566 = vmatpush1.msra.mxu0 0.0
        %567 = vmatprep.subr.mxu0 0.0
        %568 = vmatpush1.msra.mxu0 0.0
        %569 = vmatprep.subr.mxu0 0.0
        %570 = vmatpush1.msra.mxu0 0.0
        %571 = vmatprep.subr.mxu0 0.0
        %572 = vmatpush1.msra.mxu0 0.0
        %573 = vmatprep.subr.mxu0 0.0
        %574 = vmatpush1.msra.mxu0 0.0
        %575 = vmatprep.subr.mxu0 0.0
        %576 = vmatpush1.msra.mxu0 %v540
        %577 = vmatprep.subr.mxu0 0.0
        %578 = vmatpush2.msra.mxu0 0.0
        %579 = vmatprep.subr.mxu0 0.0
        %580 = vmatpush2.msra.mxu0 0.0
        %581 = vmatprep.subr.mxu0 0.0
        %582 = vmatpush2.msra.mxu0 0.0
        %583 = vmatprep.subr.mxu0 0.0
        %584 = vmatpush2.msra.mxu0 0.0
        %585 = vmatprep.subr.mxu0 0.0
        %586 = vmatpush2.msra.mxu0 0.0
        %587 = vmatprep.subr.mxu0 0.0
        %588 = vmatpush2.msra.mxu0 0.0
        %589 = vmatprep.subr.mxu0 0.0
        %590 = vmatpush2.msra.mxu0 0.0
        %591 = vmatprep.subr.mxu0 0.0
        %592 = vmatpush2.msra.mxu0 0.0
        %593 = vmatprep.subr.mxu0 0.0
        %594 = vmatpush2.msra.mxu0 0.0
        %595 = vmatprep.subr.mxu0 0.0
        %596 = vmatpush2.msra.mxu0 0.0
        %597 = vmatprep.subr.mxu0 0.0
        %598 = vmatpush2.msra.mxu0 0.0
        %599 = vmatprep.subr.mxu0 0.0
        %600 = vmatpush2.msra.mxu0 0.0
        %601 = vmatprep.subr.mxu0 0.0
        %602 = vmatpush2.msra.mxu0 0.0
        %603 = vmatprep.subr.mxu0 0.0
        %604 = vmatpush2.msra.mxu0 0.0
        %605 = vmatprep.subr.mxu0 0.0
        %606 = vmatpush2.msra.mxu0 0.0
        %607 = vmatprep.subr.mxu0 0.0
        %608 = vmatpush2.msra.mxu0 0.0
        %609 = vmatprep.mubr.f32.mxu0 0.0
        %610 = vmatmul.mubr.f32.gmra.mxu0 %v543
        %v611 = vpop.f32.mrf.mxu0
        %v612 = vadd.f32 0.0, %v611
        %v613 = vpop.f32.mrf.mxu0
        %614 = vdwg.mxu0
        %616 = vrot.lane.b32.xlu0 %v612, 16
        %v617 = vpop.permute.xlu0 %616
        %vm619 = vcmask 261248
        %620 = vst.msk [vmem:[#allocation3] sm:$0xff] %vm619, %v617
        %v621 = vld [vmem:[#allocation2] sm:$0xff]
        %v622 = vld [vmem:[#allocation2 + $0x8] sm:$0xff]
        %624 = vrot.lane.b32.xlu0 %v621, 96
        %v625 = vpop.permute.xlu0 %624
        %626 = vrot.lane.b32.xlu0 %v621, 32
        %v627 = vpop.permute.xlu0 %626
        %v628 = vsel %vm285, %v625, 0
        %v630 = vsel %vm285, %v627, 0
        %632 = vmatprep.subr.mxu0 0.0
        %633 = vmatpush1.xpose.msra.mxu0 0.0
        %634 = vmatprep.subr.mxu0 0.0
        %635 = vmatpush1.xpose.msra.mxu0 0.0
        %636 = vmatprep.subr.mxu0 0.0
        %637 = vmatpush1.xpose.msra.mxu0 0.0
        %638 = vmatprep.subr.mxu0 0.0
        %639 = vmatpush1.xpose.msra.mxu0 0.0
        %640 = vmatprep.subr.mxu0 0.0
        %641 = vmatpush1.xpose.msra.mxu0 0.0
        %642 = vmatprep.subr.mxu0 0.0
        %643 = vmatpush1.xpose.msra.mxu0 0.0
        %644 = vmatprep.subr.mxu0 0.0
        %645 = vmatpush1.xpose.msra.mxu0 0.0
        %646 = vmatprep.subr.mxu0 0.0
        %647 = vmatpush1.xpose.msra.mxu0 0.0
        %648 = vmatprep.subr.mxu0 0.0
        %649 = vmatpush1.xpose.msra.mxu0 0.0
        %650 = vmatprep.subr.mxu0 0.0
        %651 = vmatpush1.xpose.msra.mxu0 0.0
        %652 = vmatprep.subr.mxu0 0.0
        %653 = vmatpush1.xpose.msra.mxu0 0.0
        %654 = vmatprep.subr.mxu0 0.0
        %655 = vmatpush1.xpose.msra.mxu0 0.0
        %656 = vmatprep.subr.mxu0 0.0
        %657 = vmatpush1.xpose.msra.mxu0 0.0
        %658 = vmatprep.subr.mxu0 0.0
        %659 = vmatpush1.xpose.msra.mxu0 0.0
        %660 = vmatprep.subr.mxu0 0.0
        %661 = vmatpush1.xpose.msra.mxu0 0.0
        %662 = vmatprep.subr.mxu0 0.0
        %663 = vmatpush1.xpose.msra.mxu0 %v630
        %664 = vmatprep.subr.mxu0 0.0
        %665 = vmatpush2.xpose.msra.mxu0 0.0
        %666 = vmatprep.subr.mxu0 0.0
        %667 = vmatpush2.xpose.msra.mxu0 0.0
        %668 = vmatprep.subr.mxu0 0.0
        %669 = vmatpush2.xpose.msra.mxu0 0.0
        %670 = vmatprep.subr.mxu0 0.0
        %671 = vmatpush2.xpose.msra.mxu0 0.0
        %672 = vmatprep.subr.mxu0 0.0
        %673 = vmatpush2.xpose.msra.mxu0 0.0
        %674 = vmatprep.subr.mxu0 0.0
        %675 = vmatpush2.xpose.msra.mxu0 0.0
        %676 = vmatprep.subr.mxu0 0.0
        %677 = vmatpush2.xpose.msra.mxu0 0.0
        %678 = vmatprep.subr.mxu0 0.0
        %679 = vmatpush2.xpose.msra.mxu0 0.0
        %680 = vmatprep.subr.mxu0 0.0
        %681 = vmatpush2.xpose.msra.mxu0 0.0
        %682 = vmatprep.subr.mxu0 0.0
        %683 = vmatpush2.xpose.msra.mxu0 0.0
        %684 = vmatprep.subr.mxu0 0.0
        %685 = vmatpush2.xpose.msra.mxu0 0.0
        %686 = vmatprep.subr.mxu0 0.0
        %687 = vmatpush2.xpose.msra.mxu0 0.0
        %688 = vmatprep.subr.mxu0 0.0
        %689 = vmatpush2.xpose.msra.mxu0 0.0
        %690 = vmatprep.subr.mxu0 0.0
        %691 = vmatpush2.xpose.msra.mxu0 0.0
        %692 = vmatprep.subr.mxu0 0.0
        %693 = vmatpush2.xpose.msra.mxu0 0.0
        %694 = vmatprep.subr.mxu0 0.0
        %695 = vmatpush2.xpose.msra.mxu0 0.0
        %696 = vmatprep.mubr.f32.mxu0 0.0
        %697 = vmatmul.mubr.f32.gmra.mxu0 %v628
        %v698 = vpop.f32.mrf.mxu0
        %v699 = vadd.f32 0.0, %v698
        %v700 = vpop.f32.mrf.mxu0
        %701 = vdwg.mxu0
        %v702 = vsel %vm360, %v699, -inf
        %703 = vmax.xlane.f32.xlu0 %v702
        %v704 = vpop.xlane.xlu0 %703
        %v705 = vsub.f32 %v699, %v704
        %v706 = vmul.f32 %v705, 1.442695
        %v707 = vpow.pop %v706
        %v708 = vsel %vm360, %v707, 0.0
        %709 = vadd.xlane.f32.xlu0 %v708
        %v710 = vpop.xlane.xlu0 %709
        %v711 = vrcp.pop %v710
        %v712 = vmul.f32 %v707, %v711
        %714 = vrot.lane.b32.xlu0 %v622, 96
        %v715 = vpop.permute.xlu0 %714
        %v718 = vsel %vm360, %v712, 0
        %720 = vmatprep.subr.mxu0 0.0
        %721 = vmatpush1.msra.mxu0 0.0
        %722 = vmatprep.subr.mxu0 0.0
        %723 = vmatpush1.msra.mxu0 0.0
        %724 = vmatprep.subr.mxu0 0.0
        %725 = vmatpush1.msra.mxu0 0.0
        %726 = vmatprep.subr.mxu0 0.0
        %727 = vmatpush1.msra.mxu0 0.0
        %728 = vmatprep.subr.mxu0 0.0
        %729 = vmatpush1.msra.mxu0 0.0
        %730 = vmatprep.subr.mxu0 0.0
        %731 = vmatpush1.msra.mxu0 0.0
        %732 = vmatprep.subr.mxu0 0.0
        %733 = vmatpush1.msra.mxu0 0.0
        %734 = vmatprep.subr.mxu0 0.0
        %735 = vmatpush1.msra.mxu0 0.0
        %736 = vmatprep.subr.mxu0 0.0
        %737 = vmatpush1.msra.mxu0 0.0
        %738 = vmatprep.subr.mxu0 0.0
        %739 = vmatpush1.msra.mxu0 0.0
        %740 = vmatprep.subr.mxu0 0.0
        %741 = vmatpush1.msra.mxu0 0.0
        %742 = vmatprep.subr.mxu0 0.0
        %743 = vmatpush1.msra.mxu0 0.0
        %744 = vmatprep.subr.mxu0 0.0
        %745 = vmatpush1.msra.mxu0 0.0
        %746 = vmatprep.subr.mxu0 0.0
        %747 = vmatpush1.msra.mxu0 0.0
        %748 = vmatprep.subr.mxu0 0.0
        %749 = vmatpush1.msra.mxu0 0.0
        %750 = vmatprep.subr.mxu0 0.0
        %751 = vmatpush1.msra.mxu0 %v715
        %752 = vmatprep.subr.mxu0 0.0
        %753 = vmatpush2.msra.mxu0 0.0
        %754 = vmatprep.subr.mxu0 0.0
        %755 = vmatpush2.msra.mxu0 0.0
        %756 = vmatprep.subr.mxu0 0.0
        %757 = vmatpush2.msra.mxu0 0.0
        %758 = vmatprep.subr.mxu0 0.0
        %759 = vmatpush2.msra.mxu0 0.0
        %760 = vmatprep.subr.mxu0 0.0
        %761 = vmatpush2.msra.mxu0 0.0
        %762 = vmatprep.subr.mxu0 0.0
        %763 = vmatpush2.msra.mxu0 0.0
        %764 = vmatprep.subr.mxu0 0.0
        %765 = vmatpush2.msra.mxu0 0.0
        %766 = vmatprep.subr.mxu0 0.0
        %767 = vmatpush2.msra.mxu0 0.0
        %768 = vmatprep.subr.mxu0 0.0
        %769 = vmatpush2.msra.mxu0 0.0
        %770 = vmatprep.subr.mxu0 0.0
        %771 = vmatpush2.msra.mxu0 0.0
        %772 = vmatprep.subr.mxu0 0.0
        %773 = vmatpush2.msra.mxu0 0.0
        %774 = vmatprep.subr.mxu0 0.0
        %775 = vmatpush2.msra.mxu0 0.0
        %776 = vmatprep.subr.mxu0 0.0
        %777 = vmatpush2.msra.mxu0 0.0
        %778 = vmatprep.subr.mxu0 0.0
        %779 = vmatpush2.msra.mxu0 0.0
        %780 = vmatprep.subr.mxu0 0.0
        %781 = vmatpush2.msra.mxu0 0.0
        %782 = vmatprep.subr.mxu0 0.0
        %783 = vmatpush2.msra.mxu0 0.0
        %784 = vmatprep.mubr.f32.mxu0 0.0
        %785 = vmatmul.mubr.f32.gmra.mxu0 %v718
        %v786 = vpop.f32.mrf.mxu0
        %v787 = vadd.f32 0.0, %v786
        %v788 = vpop.f32.mrf.mxu0
        %789 = vdwg.mxu0
        %791 = vrot.lane.b32.xlu0 %v787, 32
        %v792 = vpop.permute.xlu0 %791
        %vm794 = vcmask 392448
        %795 = vst.msk [vmem:[#allocation3] sm:$0xff] %vm794, %v792
        %v796 = vld [vmem:[#allocation2] sm:$0xff]
        %v797 = vld [vmem:[#allocation2 + $0x8] sm:$0xff]
        %799 = vrot.lane.b32.xlu0 %v796, 80
        %v800 = vpop.permute.xlu0 %799
        %801 = vrot.lane.b32.xlu0 %v796, 16
        %v802 = vpop.permute.xlu0 %801
        %v803 = vsel %vm285, %v800, 0
        %v805 = vsel %vm285, %v802, 0
        %807 = vmatprep.subr.mxu0 0.0
        %808 = vmatpush1.xpose.msra.mxu0 0.0
        %809 = vmatprep.subr.mxu0 0.0
        %810 = vmatpush1.xpose.msra.mxu0 0.0
        %811 = vmatprep.subr.mxu0 0.0
        %812 = vmatpush1.xpose.msra.mxu0 0.0
        %813 = vmatprep.subr.mxu0 0.0
        %814 = vmatpush1.xpose.msra.mxu0 0.0
        %815 = vmatprep.subr.mxu0 0.0
        %816 = vmatpush1.xpose.msra.mxu0 0.0
        %817 = vmatprep.subr.mxu0 0.0
        %818 = vmatpush1.xpose.msra.mxu0 0.0
        %819 = vmatprep.subr.mxu0 0.0
        %820 = vmatpush1.xpose.msra.mxu0 0.0
        %821 = vmatprep.subr.mxu0 0.0
        %822 = vmatpush1.xpose.msra.mxu0 0.0
        %823 = vmatprep.subr.mxu0 0.0
        %824 = vmatpush1.xpose.msra.mxu0 0.0
        %825 = vmatprep.subr.mxu0 0.0
        %826 = vmatpush1.xpose.msra.mxu0 0.0
        %827 = vmatprep.subr.mxu0 0.0
        %828 = vmatpush1.xpose.msra.mxu0 0.0
        %829 = vmatprep.subr.mxu0 0.0
        %830 = vmatpush1.xpose.msra.mxu0 0.0
        %831 = vmatprep.subr.mxu0 0.0
        %832 = vmatpush1.xpose.msra.mxu0 0.0
        %833 = vmatprep.subr.mxu0 0.0
        %834 = vmatpush1.xpose.msra.mxu0 0.0
        %835 = vmatprep.subr.mxu0 0.0
        %836 = vmatpush1.xpose.msra.mxu0 0.0
        %837 = vmatprep.subr.mxu0 0.0
        %838 = vmatpush1.xpose.msra.mxu0 %v805
        %839 = vmatprep.subr.mxu0 0.0
        %840 = vmatpush2.xpose.msra.mxu0 0.0
        %841 = vmatprep.subr.mxu0 0.0
        %842 = vmatpush2.xpose.msra.mxu0 0.0
        %843 = vmatprep.subr.mxu0 0.0
        %844 = vmatpush2.xpose.msra.mxu0 0.0
        %845 = vmatprep.subr.mxu0 0.0
        %846 = vmatpush2.xpose.msra.mxu0 0.0
        %847 = vmatprep.subr.mxu0 0.0
        %848 = vmatpush2.xpose.msra.mxu0 0.0
        %849 = vmatprep.subr.mxu0 0.0
        %850 = vmatpush2.xpose.msra.mxu0 0.0
        %851 = vmatprep.subr.mxu0 0.0
        %852 = vmatpush2.xpose.msra.mxu0 0.0
        %853 = vmatprep.subr.mxu0 0.0
        %854 = vmatpush2.xpose.msra.mxu0 0.0
        %855 = vmatprep.subr.mxu0 0.0
        %856 = vmatpush2.xpose.msra.mxu0 0.0
        %857 = vmatprep.subr.mxu0 0.0
        %858 = vmatpush2.xpose.msra.mxu0 0.0
        %859 = vmatprep.subr.mxu0 0.0
        %860 = vmatpush2.xpose.msra.mxu0 0.0
        %861 = vmatprep.subr.mxu0 0.0
        %862 = vmatpush2.xpose.msra.mxu0 0.0
        %863 = vmatprep.subr.mxu0 0.0
        %864 = vmatpush2.xpose.msra.mxu0 0.0
        %865 = vmatprep.subr.mxu0 0.0
        %866 = vmatpush2.xpose.msra.mxu0 0.0
        %867 = vmatprep.subr.mxu0 0.0
        %868 = vmatpush2.xpose.msra.mxu0 0.0
        %869 = vmatprep.subr.mxu0 0.0
        %870 = vmatpush2.xpose.msra.mxu0 0.0
        %871 = vmatprep.mubr.f32.mxu0 0.0
        %872 = vmatmul.mubr.f32.gmra.mxu0 %v803
        %v873 = vpop.f32.mrf.mxu0
        %v874 = vadd.f32 0.0, %v873
        %v875 = vpop.f32.mrf.mxu0
        %876 = vdwg.mxu0
        %v877 = vsel %vm360, %v874, -inf
        %878 = vmax.xlane.f32.xlu0 %v877
        %v879 = vpop.xlane.xlu0 %878
        %v880 = vsub.f32 %v874, %v879
        %v881 = vmul.f32 %v880, 1.442695
        %v882 = vpow.pop %v881
        %v883 = vsel %vm360, %v882, 0.0
        %884 = vadd.xlane.f32.xlu0 %v883
        %v885 = vpop.xlane.xlu0 %884
        %v886 = vrcp.pop %v885
        %v887 = vmul.f32 %v882, %v886
        %889 = vrot.lane.b32.xlu0 %v797, 80
        %v890 = vpop.permute.xlu0 %889
        %v893 = vsel %vm360, %v887, 0
        %895 = vmatprep.subr.mxu0 0.0
        %896 = vmatpush1.msra.mxu0 0.0
        %897 = vmatprep.subr.mxu0 0.0
        %898 = vmatpush1.msra.mxu0 0.0
        %899 = vmatprep.subr.mxu0 0.0
        %900 = vmatpush1.msra.mxu0 0.0
        %901 = vmatprep.subr.mxu0 0.0
        %902 = vmatpush1.msra.mxu0 0.0
        %903 = vmatprep.subr.mxu0 0.0
        %904 = vmatpush1.msra.mxu0 0.0
        %905 = vmatprep.subr.mxu0 0.0
        %906 = vmatpush1.msra.mxu0 0.0
        %907 = vmatprep.subr.mxu0 0.0
        %908 = vmatpush1.msra.mxu0 0.0
        %909 = vmatprep.subr.mxu0 0.0
        %910 = vmatpush1.msra.mxu0 0.0
        %911 = vmatprep.subr.mxu0 0.0
        %912 = vmatpush1.msra.mxu0 0.0
        %913 = vmatprep.subr.mxu0 0.0
        %914 = vmatpush1.msra.mxu0 0.0
        %915 = vmatprep.subr.mxu0 0.0
        %916 = vmatpush1.msra.mxu0 0.0
        %917 = vmatprep.subr.mxu0 0.0
        %918 = vmatpush1.msra.mxu0 0.0
        %919 = vmatprep.subr.mxu0 0.0
        %920 = vmatpush1.msra.mxu0 0.0
        %921 = vmatprep.subr.mxu0 0.0
        %922 = vmatpush1.msra.mxu0 0.0
        %923 = vmatprep.subr.mxu0 0.0
        %924 = vmatpush1.msra.mxu0 0.0
        %925 = vmatprep.subr.mxu0 0.0
        %926 = vmatpush1.msra.mxu0 %v890
        %927 = vmatprep.subr.mxu0 0.0
        %928 = vmatpush2.msra.mxu0 0.0
        %929 = vmatprep.subr.mxu0 0.0
        %930 = vmatpush2.msra.mxu0 0.0
        %931 = vmatprep.subr.mxu0 0.0
        %932 = vmatpush2.msra.mxu0 0.0
        %933 = vmatprep.subr.mxu0 0.0
        %934 = vmatpush2.msra.mxu0 0.0
        %935 = vmatprep.subr.mxu0 0.0
        %936 = vmatpush2.msra.mxu0 0.0
        %937 = vmatprep.subr.mxu0 0.0
        %938 = vmatpush2.msra.mxu0 0.0
        %939 = vmatprep.subr.mxu0 0.0
        %940 = vmatpush2.msra.mxu0 0.0
        %941 = vmatprep.subr.mxu0 0.0
        %942 = vmatpush2.msra.mxu0 0.0
        %943 = vmatprep.subr.mxu0 0.0
        %944 = vmatpush2.msra.mxu0 0.0
        %945 = vmatprep.subr.mxu0 0.0
        %946 = vmatpush2.msra.mxu0 0.0
        %947 = vmatprep.subr.mxu0 0.0
        %948 = vmatpush2.msra.mxu0 0.0
        %949 = vmatprep.subr.mxu0 0.0
        %950 = vmatpush2.msra.mxu0 0.0
        %951 = vmatprep.subr.mxu0 0.0
        %952 = vmatpush2.msra.mxu0 0.0
        %953 = vmatprep.subr.mxu0 0.0
        %954 = vmatpush2.msra.mxu0 0.0
        %955 = vmatprep.subr.mxu0 0.0
        %956 = vmatpush2.msra.mxu0 0.0
        %957 = vmatprep.subr.mxu0 0.0
        %958 = vmatpush2.msra.mxu0 0.0
        %959 = vmatprep.mubr.f32.mxu0 0.0
        %960 = vmatmul.mubr.f32.gmra.mxu0 %v893
        %v961 = vpop.f32.mrf.mxu0
        %v962 = vadd.f32 0.0, %v961
        %v963 = vpop.f32.mrf.mxu0
        %964 = vdwg.mxu0
        %966 = vrot.lane.b32.xlu0 %v962, 48
        %v967 = vpop.permute.xlu0 %966
        %vm969 = vcmask 523648
        %970 = vst.msk [vmem:[#allocation3] sm:$0xff] %vm969, %v967
        %v971 = vld [vmem:[#allocation3] sm:$0xff]
        %v972 = vld [vmem:[%s2] sm:$0xff]
        %v973 = vld [vmem:[%s2 + $0x8] sm:$0xff]
        %v974 = vld [vmem:[%s2 + $0x10] sm:$0xff]
        %v975 = vld [vmem:[%s2 + $0x18] sm:$0xff]
        %v976 = vld [vmem:[%s2 + $0x20] sm:$0xff]
        %v977 = vld [vmem:[%s2 + $0x28] sm:$0xff]
        %v978 = vld [vmem:[%s2 + $0x30] sm:$0xff]
        %v979 = vld [vmem:[%s2 + $0x38] sm:$0xff]
        %v980 = vld [vmem:[%s3] sm:$0x1]
        %v982 = vlaneseq
        %v983 = vshrl.u32 %v982, 7
        %v984 = vsub.s32 0, %v983
        %v985 = vrot.slane %v980, %v984
        %v988 = vsel %vm278, %v971, 0
        %990 = vmatprep.subr.mxu0 0.0
        %991 = vmatpush1.msra.mxu0 0.0
        %992 = vmatprep.subr.mxu0 0.0
        %993 = vmatpush1.msra.mxu0 0.0
        %994 = vmatprep.subr.mxu0 0.0
        %995 = vmatpush1.msra.mxu0 0.0
        %996 = vmatprep.subr.mxu0 0.0
        %997 = vmatpush1.msra.mxu0 0.0
        %998 = vmatprep.subr.mxu0 0.0
        %999 = vmatpush1.msra.mxu0 0.0
        %1000 = vmatprep.subr.mxu0 0.0
        %1001 = vmatpush1.msra.mxu0 0.0
        %1002 = vmatprep.subr.mxu0 0.0
        %1003 = vmatpush1.msra.mxu0 0.0
        %1004 = vmatprep.subr.mxu0 0.0
        %1005 = vmatpush1.msra.mxu0 0.0
        %1006 = vmatprep.subr.mxu0 0.0
        %1007 = vmatpush1.msra.mxu0 %v979
        %1008 = vmatprep.subr.mxu0 0.0
        %1009 = vmatpush1.msra.mxu0 %v978
        %1010 = vmatprep.subr.mxu0 0.0
        %1011 = vmatpush1.msra.mxu0 %v977
        %1012 = vmatprep.subr.mxu0 0.0
        %1013 = vmatpush1.msra.mxu0 %v976
        %1014 = vmatprep.subr.mxu0 0.0
        %1015 = vmatpush1.msra.mxu0 %v975
        %1016 = vmatprep.subr.mxu0 0.0
        %1017 = vmatpush1.msra.mxu0 %v974
        %1018 = vmatprep.subr.mxu0 0.0
        %1019 = vmatpush1.msra.mxu0 %v973
        %1020 = vmatprep.subr.mxu0 0.0
        %1021 = vmatpush1.msra.mxu0 %v972
        %1022 = vmatprep.subr.mxu0 0.0
        %1023 = vmatpush2.msra.mxu0 0.0
        %1024 = vmatprep.subr.mxu0 0.0
        %1025 = vmatpush2.msra.mxu0 0.0
        %1026 = vmatprep.subr.mxu0 0.0
        %1027 = vmatpush2.msra.mxu0 0.0
        %1028 = vmatprep.subr.mxu0 0.0
        %1029 = vmatpush2.msra.mxu0 0.0
        %1030 = vmatprep.subr.mxu0 0.0
        %1031 = vmatpush2.msra.mxu0 0.0
        %1032 = vmatprep.subr.mxu0 0.0
        %1033 = vmatpush2.msra.mxu0 0.0
        %1034 = vmatprep.subr.mxu0 0.0
        %1035 = vmatpush2.msra.mxu0 0.0
        %1036 = vmatprep.subr.mxu0 0.0
        %1037 = vmatpush2.msra.mxu0 0.0
        %1038 = vmatprep.subr.mxu0 0.0
        %1039 = vmatpush2.msra.mxu0 0.0
        %1040 = vmatprep.subr.mxu0 0.0
        %1041 = vmatpush2.msra.mxu0 0.0
        %1042 = vmatprep.subr.mxu0 0.0
        %1043 = vmatpush2.msra.mxu0 0.0
        %1044 = vmatprep.subr.mxu0 0.0
        %1045 = vmatpush2.msra.mxu0 0.0
        %1046 = vmatprep.subr.mxu0 0.0
        %1047 = vmatpush2.msra.mxu0 0.0
        %1048 = vmatprep.subr.mxu0 0.0
        %1049 = vmatpush2.msra.mxu0 0.0
        %1050 = vmatprep.subr.mxu0 0.0
        %1051 = vmatpush2.msra.mxu0 0.0
        %1052 = vmatprep.subr.mxu0 0.0
        %1053 = vmatpush2.msra.mxu0 0.0
        %1054 = vmatprep.mubr.f32.mxu0 0.0
        %1055 = vmatmul.mubr.f32.gmra.mxu0 %v988
        %v1056 = vpop.f32.mrf.mxu0
        %v1057 = vadd.f32 %v985, %v1056
        %v1058 = vpop.f32.mrf.mxu0
        %1059 = vdwg.mxu0
        %1060 = vst.msk [vmem:[%s188] sm:$0xff] %vm202, %v1057
        %s1061 = sand.u32 %s115, 1
        %s1062 = scalar_lea.sflag [#allocation5], %s1061
        %s1063 = sand.u32 %s115, 1
        %s1064 = smul.addr %s1063, 8
        %s1065 = scalar_lea.vmem [#allocation4], %s1064
        // Predicated region
        $region37: #{tpu_custom_call.1} parent=35 // pred_check
          %p1066 = pneg %p125
        $region38: #{tpu_custom_call.1} parent=35 // pred_check_branch
          %1068 = sbr.rel (%p1066) target = $region40
        $region39: #{tpu_custom_call.1} parent=35 // pred_region
          %s1070 = ssub.s32 128, 128
          %1071 = vsyncadd %s1062, %s1070
          %s1072 = smul.addr %s18, 128
          %s1073 = scalar_lea.hbm %s4, %s1072
          %s1075 = sshll.u32 %s1065, 4
          %s1076 = int_to_ptr.vmem [resolvable:$true] %s1075
          %1078 = dma.vmem_to_hbm [thread:$0]  %s1076, 128, %s1073, %s1062
        $region40: #{tpu_custom_call.1} parent=35 // pred_fallthru
          _
      $region36: #{tpu_custom_call.1} parent=5 // pred_fallthru
        _
      %p1079 = scmp.le.s32.totalorder 2, %s13
      // Predicated region
      $region41: #{tpu_custom_call.1} parent=5 // pred_check
        %p1080 = pneg %p1079
      $region42: #{tpu_custom_call.1} parent=5 // pred_check_branch
        %1082 = sbr.rel (%p1080) target = $region44
      $region43: #{tpu_custom_call.1} parent=5 // pred_region
        %s1083 = ssub.s32 %s13, 2
        // Predicated region
        $region45: #{tpu_custom_call.1} parent=43 // pred_check
          %p1084 = pneg %p131
        $region46: #{tpu_custom_call.1} parent=43 // pred_check_branch
          %1086 = sbr.rel (%p1084) target = $region48
        $region47: #{tpu_custom_call.1} parent=43 // pred_region
          %s1087 = sand.u32 %s116, 1
          %s1088 = scalar_lea.sflag [#allocation5], %s1087
          %s1089 = sand.u32 %s116, 1
          %s1090 = smul.addr %s1089, 8
          %s1091 = scalar_lea.vmem [#allocation4], %s1090
          %1092 = dma.done %s1088, 128
        $region48: #{tpu_custom_call.1} parent=43 // pred_fallthru
          _
      $region44: #{tpu_custom_call.1} parent=5 // pred_fallthru
        _
    $region6: #{tpu_custom_call.1} parent=1 // loop_footer
      %s17 = sadd.s32 1, %s13
    $region7: #{tpu_custom_call.1} parent=1 // loop_footer_branch
      %12 = sbr.rel target = $region3
    $region8: #{tpu_custom_call.1} parent=1 // loop_exit
      _
    %1093 = vsyncpa [#allocation5], 1
    %s1094 = scalar_lea.sflag [#allocation5], 1
    %1095 = vsyncpa %s1094, 1

</llo_original>
